<compile_context>
chip_gen: v7x
topology: tpu7x:2x2x1
jax: 0.10.0
libtpu: 0.0.40
codegen_flags: <defaults>
</compile_context>

<pallas_src>
import functools

import jax
import jax.numpy as jnp
from jax.experimental import pallas as pl
from jax.experimental.pallas import tpu as pltpu


def _triplet_loss_kernel(a_ref, p_ref, n_ref, o_ref, acc_ref, *,
                         alpha, beta, margin, total_b, tile_b):
    i = pl.program_id(0)

    @pl.when(i == 0)
    def _():
        acc_ref[0] = jnp.float32(0.0)

    a = a_ref[...].astype(jnp.float32)
    p = p_ref[...].astype(jnp.float32)
    n = n_ref[...].astype(jnp.float32)

    dp = a - p
    dn = a - n
    # Fused lane reduction: alpha*||a-p||^2 - ||a-n||^2 in a single pass.
    dist_term = jnp.sum(alpha * dp * dp - dn * dn, axis=1, keepdims=True)  # (TB, 1)
    add_con = jnp.abs(jnp.sum(a * n, axis=1, keepdims=True))               # (TB, 1)

    losses = jnp.maximum(dist_term + beta * add_con + margin, 0.0)         # (TB, 1)

    # Mask padded tail rows (last ragged tile) so they don't pollute the mean.
    row_ids = i * tile_b + jax.lax.broadcasted_iota(jnp.int32, losses.shape, 0)
    losses = jnp.where(row_ids < total_b, losses, 0.0)

    acc_ref[0] += jnp.sum(losses)

    @pl.when(i == pl.num_programs(0) - 1)
    def _():
        o_ref[0] = acc_ref[0] / jnp.float32(total_b)


def _choose_tile_b(B, D, itemsize):
    """Largest batch tile such that 3 inputs x 2 buffers fits ~24 MiB VMEM."""
    budget = 24 * 1024 * 1024
    per_row = 3 * 2 * D * itemsize          # 3 inputs, double-buffered
    tb = budget // max(per_row, 1)
    tb = min(tb, 1024)                      # diminishing returns past ~1k rows
    tb = (tb // 16) * 16                    # multiple of 16 (f32 & bf16 sublane tiling)
    tb = max(tb, 16)
    if tb >= B:
        return B                            # single full block (always legal)
    return tb


def triplet_loss_euclidean(anchor, positive, negative,
                           alpha=1.0, beta=0.1, margin=2.0, tile_b=None):
    """Pallas equivalent of TripletLossEuclidean_Criteria.forward."""
    B, D = anchor.shape
    itemsize = jnp.dtype(anchor.dtype).itemsize
    if tile_b is None:
        tile_b = _choose_tile_b(B, D, itemsize)
    TB = min(int(tile_b), B)
    grid = (pl.cdiv(B, TB),)

    kernel = functools.partial(
        _triplet_loss_kernel,
        alpha=float(alpha), beta=float(beta), margin=float(margin),
        total_b=B, tile_b=TB,
    )

    cost = pl.CostEstimate(
        flops=10 * B * D,
        transcendentals=0,
        bytes_accessed=3 * B * D * itemsize + 4,
    )

    out = pl.pallas_call(
        kernel,
        out_shape=jax.ShapeDtypeStruct((1,), jnp.float32),
        grid_spec=pltpu.PrefetchScalarGridSpec(
            num_scalar_prefetch=0,
            grid=grid,
            in_specs=[
                pl.BlockSpec((TB, D), lambda i: (i, 0)),
                pl.BlockSpec((TB, D), lambda i: (i, 0)),
                pl.BlockSpec((TB, D), lambda i: (i, 0)),
            ],
            out_specs=pl.BlockSpec(memory_space=pltpu.MemorySpace.SMEM),
            scratch_shapes=[pltpu.SMEM((1,), jnp.float32)],
        ),
        compiler_params=pltpu.CompilerParams(
            dimension_semantics=("arbitrary",),
            vmem_limit_bytes=48 * 1024 * 1024,
        ),
        cost_estimate=cost,
    )(anchor, positive, negative)
    return out[0]


def _reference(anchor, positive, negative, alpha=1.0, beta=0.1, margin=2.0):
    dp = jnp.sum((anchor - positive) ** 2, axis=1)
    dn = jnp.sum((anchor - negative) ** 2, axis=1)
    ac = jnp.abs(jnp.sum(anchor * negative, axis=1))
    losses = jax.nn.relu(alpha * dp - dn + beta * ac + margin)
    return jnp.mean(losses)


if __name__ == "__main__":
    # Case 1: small single-block case.
    k1, k2, k3 = jax.random.split(jax.random.PRNGKey(0), 3)
    B, D = 16, 256
    anchor = jax.random.normal(k1, (B, D), dtype=jnp.float32)
    positive = jax.random.normal(k2, (B, D), dtype=jnp.float32)
    negative = jax.random.normal(k3, (B, D), dtype=jnp.float32)

    out = triplet_loss_euclidean(anchor, positive, negative)
    jax.block_until_ready(out)
    ref = _reference(anchor, positive, negative)
    assert jnp.allclose(out, ref, rtol=1e-5, atol=1e-5), (out, ref)

    # Case 2: force the tiled / accumulating path, including a ragged last tile
    # (B=40, TB=16 -> 3 grid steps, last one masked).
    k4, k5, k6 = jax.random.split(jax.random.PRNGKey(1), 3)
    B2, D2 = 40, 128
    a2 = jax.random.normal(k4, (B2, D2), dtype=jnp.float32)
    p2 = jax.random.normal(k5, (B2, D2), dtype=jnp.float32)
    n2 = jax.random.normal(k6, (B2, D2), dtype=jnp.float32)

    out2 = triplet_loss_euclidean(a2, p2, n2, tile_b=16)
    jax.block_until_ready(out2)
    ref2 = _reference(a2, p2, n2)
    assert jnp.allclose(out2, ref2, rtol=1e-5, atol=1e-5), (out2, ref2)

    print("KERNEL_OK")
</pallas_src>

<mosaic_0001>
module attributes {stable_mosaic.version = 11 : i64} {
  func.func @_triplet_loss_kernel(%arg0: i32, %arg1: memref<16x256xf32, #tpu.memory_space<vmem>>, %arg2: memref<16x256xf32, #tpu.memory_space<vmem>>, %arg3: memref<16x256xf32, #tpu.memory_space<vmem>>, %arg4: memref<1xf32, #tpu.memory_space<smem>>, %arg5: memref<1xf32, #tpu.memory_space<smem>>) attributes {dimension_semantics = [#tpu.dimension_semantics<arbitrary>], iteration_bounds = array<i64: 1>, scalar_prefetch = 0 : i64, scratch_operands = 1 : i64, tpu.core_type = #tpu.core_type<tc>, window_params = [{transform_indices = @transform_0, window_bounds = array<i64: 16, 256>}, {transform_indices = @transform_1, window_bounds = array<i64: 16, 256>}, {transform_indices = @transform_2, window_bounds = array<i64: 16, 256>}, {transform_indices = @transform_3, window_bounds = array<i64: 1>}]} {
    %c0_i32 = arith.constant 0 : i32
    %0 = arith.cmpi eq, %arg0, %c0_i32 : i32
    %1 = arith.extui %0 : i1 to i32
    %c0_i32_0 = arith.constant 0 : i32
    %2 = arith.cmpi ne, %1, %c0_i32_0 : i32
    scf.if %2 {
      %cst_18 = arith.constant 0.000000e+00 : f32
      %c0_19 = arith.constant 0 : index
      %44 = memref.load %arg5[%c0_19] : memref<1xf32, #tpu.memory_space<smem>>
      memref.store %cst_18, %arg5[%c0_19] : memref<1xf32, #tpu.memory_space<smem>>
    } else {
    }
    %c0 = arith.constant 0 : index
    %c0_1 = arith.constant 0 : index
    %3 = vector.load %arg1[%c0, %c0_1] : memref<16x256xf32, #tpu.memory_space<vmem>>, vector<16x256xf32>
    %c0_2 = arith.constant 0 : index
    %c0_3 = arith.constant 0 : index
    %4 = vector.load %arg2[%c0_2, %c0_3] : memref<16x256xf32, #tpu.memory_space<vmem>>, vector<16x256xf32>
    %c0_4 = arith.constant 0 : index
    %c0_5 = arith.constant 0 : index
    %5 = vector.load %arg3[%c0_4, %c0_5] : memref<16x256xf32, #tpu.memory_space<vmem>>, vector<16x256xf32>
    %6 = arith.subf %3, %4 : vector<16x256xf32>
    %7 = arith.subf %3, %5 : vector<16x256xf32>
    %cst = arith.constant 1.000000e+00 : f32
    %8 = vector.broadcast %cst : f32 to vector<16x256xf32>
    %9 = arith.mulf %8, %6 : vector<16x256xf32>
    %10 = arith.mulf %9, %6 : vector<16x256xf32>
    %11 = arith.mulf %7, %7 : vector<16x256xf32>
    %12 = arith.subf %10, %11 : vector<16x256xf32>
    %cst_6 = arith.constant dense<0.000000e+00> : vector<16xf32>
    %13 = vector.multi_reduction <add>, %12, %cst_6 [1] : vector<16x256xf32> to vector<16xf32>
    %14 = vector.shape_cast %13 : vector<16xf32> to vector<16x1xf32>
    %15 = arith.mulf %3, %5 : vector<16x256xf32>
    %cst_7 = arith.constant dense<0.000000e+00> : vector<16xf32>
    %16 = vector.multi_reduction <add>, %15, %cst_7 [1] : vector<16x256xf32> to vector<16xf32>
    %17 = vector.shape_cast %16 : vector<16xf32> to vector<16x1xf32>
    %18 = math.absf %17 : vector<16x1xf32>
    %cst_8 = arith.constant 1.000000e-01 : f32
    %19 = vector.broadcast %cst_8 : f32 to vector<16x1xf32>
    %20 = arith.mulf %19, %18 : vector<16x1xf32>
    %21 = arith.addf %14, %20 : vector<16x1xf32>
    %cst_9 = arith.constant 2.000000e+00 : f32
    %22 = vector.broadcast %cst_9 : f32 to vector<16x1xf32>
    %23 = arith.addf %21, %22 : vector<16x1xf32>
    %cst_10 = arith.constant 0.000000e+00 : f32
    %24 = vector.broadcast %cst_10 : f32 to vector<16x1xf32>
    %25 = arith.maximumf %23, %24 : vector<16x1xf32>
    %c16_i32 = arith.constant 16 : i32
    %26 = arith.muli %arg0, %c16_i32 : i32
    %27 = tpu.iota {dimensions = array<i32: 0>} : vector<16x1xi32>
    %28 = vector.broadcast %26 : i32 to vector<16x1xi32>
    %29 = arith.addi %28, %27 : vector<16x1xi32>
    %c16_i32_11 = arith.constant 16 : i32
    %30 = vector.broadcast %c16_i32_11 : i32 to vector<16x1xi32>
    %31 = arith.cmpi slt, %29, %30 : vector<16x1xi32>
    %cst_12 = arith.constant 0.000000e+00 : f32
    %32 = vector.broadcast %cst_12 : f32 to vector<16x1xf32>
    %33 = arith.select %31, %25, %32 : vector<16x1xi1>, vector<16x1xf32>
    %c0_13 = arith.constant 0 : index
    %34 = memref.load %arg5[%c0_13] : memref<1xf32, #tpu.memory_space<smem>>
    %35 = vector.shape_cast %33 : vector<16x1xf32> to vector<1x16x1xf32>
    %cst_14 = arith.constant dense<0.000000e+00> : vector<1xf32>
    %36 = vector.multi_reduction <add>, %35, %cst_14 [1, 2] : vector<1x16x1xf32> to vector<1xf32>
    %37 = vector.shape_cast %36 : vector<1xf32> to vector<1x1x1xf32>
    %38 = vector.extract %37[0, 0, 0] : f32 from vector<1x1x1xf32>
    %39 = arith.addf %34, %38 : f32
    %c0_15 = arith.constant 0 : index
    %40 = memref.load %arg5[%c0_15] : memref<1xf32, #tpu.memory_space<smem>>
    memref.store %39, %arg5[%c0_15] : memref<1xf32, #tpu.memory_space<smem>>
    %c0_i32_16 = arith.constant 0 : i32
    %41 = arith.cmpi eq, %arg0, %c0_i32_16 : i32
    %42 = arith.extui %41 : i1 to i32
    %c0_i32_17 = arith.constant 0 : i32
    %43 = arith.cmpi ne, %42, %c0_i32_17 : i32
    scf.if %43 {
      %c0_18 = arith.constant 0 : index
      %44 = memref.load %arg5[%c0_18] : memref<1xf32, #tpu.memory_space<smem>>
      %cst_19 = arith.constant 1.600000e+01 : f32
      %45 = arith.divf %44, %cst_19 : f32
      %c0_20 = arith.constant 0 : index
      %46 = memref.load %arg4[%c0_20] : memref<1xf32, #tpu.memory_space<smem>>
      memref.store %45, %arg4[%c0_20] : memref<1xf32, #tpu.memory_space<smem>>
    } else {
    }
    return
  }
  func.func @transform_0(%arg0: i32) -> (i32, i32) {
    %c0_i32 = arith.constant 0 : i32
    %c0_i32_0 = arith.constant 0 : i32
    return %arg0, %c0_i32 : i32, i32
  }
  func.func @transform_1(%arg0: i32) -> (i32, i32) {
    %c0_i32 = arith.constant 0 : i32
    %c0_i32_0 = arith.constant 0 : i32
    return %arg0, %c0_i32 : i32, i32
  }
  func.func @transform_2(%arg0: i32) -> (i32, i32) {
    %c0_i32 = arith.constant 0 : i32
    %c0_i32_0 = arith.constant 0 : i32
    return %arg0, %c0_i32 : i32, i32
  }
  func.func @transform_3(%arg0: i32) -> i32 {
    %c0_i32 = arith.constant 0 : i32
    %c0_i32_0 = arith.constant 0 : i32
    return %c0_i32 : i32
  }
}

</mosaic_0001>

<llo_original>
// kernel: tpu_custom_call.1
$region0: #{tpu_custom_call.1}
  #allocation0 [shape = 'u32[]', space=smem, size = 0x4, offset = 0x4, fixed_abs, tag = 'smem constant byte address 0x4 - core index']
  #allocation1 [shape = 'u32[144,128]{1,0:T(1,128)}', space=vmem, size = 0x12000, scoped, tag = 'internal scratch']
  #allocation2 [shape = 'f32[1]{0:T(128)}', space=smem, size = 0x200, scoped, tag = 'scratch operand']
  %s0 = inlined_call_operand.hbm [shape: f32[16,256], index: 0, kind: input, shape index: {}]
  %s1 = inlined_call_operand.hbm [shape: f32[16,256], index: 1, kind: input, shape index: {}]
  %s2 = inlined_call_operand.hbm [shape: f32[16,256], index: 2, kind: input, shape index: {}]
  %s3 = inlined_call_operand.hbm [shape: f32[1], index: 3, kind: output, shape index: {}]
  %s4 = sld [smem:[#allocation0]]
  $region42: #{tpu_custom_call.1} parent=0
    _
  %s6 = ssub.s32 1, %s4
  %s7 = scalar_select 0, %s6, %s4
  $region1: #{tpu_custom_call.1} parent=0
    #allocation3 [shape = 'u8[16384]{0}', space=vmem, size = 0x4000, scoped, tag = 'input window, operand 0, single buffered']
    #allocation4 [shape = 's32[1]{0}', space=sflag, size = 0x4, scoped, tag = 'scoped memory for tpu_custom_call.1']
    #allocation5 [shape = 's32[1]{0}', space=sflag, size = 0x4, scoped, tag = 'scoped memory for tpu_custom_call.1']
    #allocation6 [shape = 'u8[16384]{0}', space=vmem, size = 0x4000, scoped, tag = 'input window, operand 1, single buffered']
    #allocation7 [shape = 's32[1]{0}', space=sflag, size = 0x4, scoped, tag = 'scoped memory for tpu_custom_call.1']
    #allocation8 [shape = 'u8[16384]{0}', space=vmem, size = 0x4000, scoped, tag = 'input window, operand 2, single buffered']
    #allocation9 [shape = 'u8[512]{0}', space=smem, size = 0x200, scoped, tag = 'output window, operand 0, single buffered']
    %8 = vsyncpa [#allocation4], 0
    %9 = vsyncpa [#allocation7], 0
    %10 = vsyncpa [#allocation5], 0
    // Predicated region
    $region2: #{tpu_custom_call.1} parent=1 // pred_check
      _
    $region3: #{tpu_custom_call.1} parent=1 // pred_check_branch
      %12 = sbr.rel (0) target = $region5
    $region4: #{tpu_custom_call.1} parent=1 // pred_region
      %s14 = ssub.s32 512, 512
      %15 = vsyncadd [#allocation4], %s14
      %s16 = sshll.u32 [#allocation3], 4
      %s17 = int_to_ptr.vmem [resolvable:$true] %s16
      %22 = dma.hbm_to_vmem [thread:$0]  %s0, 512, %s17, [#allocation4], 256, 256, 16
    $region5: #{tpu_custom_call.1} parent=1 // pred_fallthru
      _
    // Predicated region
    $region6: #{tpu_custom_call.1} parent=1 // pred_check
      _
    $region7: #{tpu_custom_call.1} parent=1 // pred_check_branch
      %24 = sbr.rel (0) target = $region9
    $region8: #{tpu_custom_call.1} parent=1 // pred_region
      %s26 = ssub.s32 512, 512
      %27 = vsyncadd [#allocation7], %s26
      %s28 = sshll.u32 [#allocation6], 4
      %s29 = int_to_ptr.vmem [resolvable:$true] %s28
      %34 = dma.hbm_to_vmem [thread:$0]  %s1, 512, %s29, [#allocation7], 256, 256, 16
    $region9: #{tpu_custom_call.1} parent=1 // pred_fallthru
      _
    // Predicated region
    $region10: #{tpu_custom_call.1} parent=1 // pred_check
      _
    $region11: #{tpu_custom_call.1} parent=1 // pred_check_branch
      %36 = sbr.rel (0) target = $region13
    $region12: #{tpu_custom_call.1} parent=1 // pred_region
      %s38 = ssub.s32 512, 512
      %39 = vsyncadd [#allocation7], %s38
      %s40 = sshll.u32 [#allocation8], 4
      %s41 = int_to_ptr.vmem [resolvable:$true] %s40
      %46 = dma.hbm_to_vmem [thread:$0]  %s2, 512, %s41, [#allocation7], 256, 256, 16
    $region13: #{tpu_custom_call.1} parent=1 // pred_fallthru
      _
    // Predicated region
    $region14: #{tpu_custom_call.1} parent=1 // pred_check
      _
    $region15: #{tpu_custom_call.1} parent=1 // pred_check_branch
      %48 = sbr.rel (0) target = $region17
    $region16: #{tpu_custom_call.1} parent=1 // pred_region
      %49 = dma.done [#allocation4], 512
    $region17: #{tpu_custom_call.1} parent=1 // pred_fallthru
      _
    // Predicated region
    $region18: #{tpu_custom_call.1} parent=1 // pred_check
      _
    $region19: #{tpu_custom_call.1} parent=1 // pred_check_branch
      %51 = sbr.rel (0) target = $region21
    $region20: #{tpu_custom_call.1} parent=1 // pred_region
      %52 = dma.done [#allocation7], 512
    $region21: #{tpu_custom_call.1} parent=1 // pred_fallthru
      _
    // Predicated region
    $region22: #{tpu_custom_call.1} parent=1 // pred_check
      _
    $region23: #{tpu_custom_call.1} parent=1 // pred_check_branch
      %54 = sbr.rel (0) target = $region25
    $region24: #{tpu_custom_call.1} parent=1 // pred_region
      %55 = dma.done [#allocation7], 512
    $region25: #{tpu_custom_call.1} parent=1 // pred_fallthru
      _
    %p56 = scmp.eq.s32.totalorder 0, 0
    // Predicated region
    $region26: #{tpu_custom_call.1} parent=1 // pred_check
      %p57 = pneg %p56
    $region27: #{tpu_custom_call.1} parent=1 // pred_check_branch
      %59 = sbr.rel (%p57) target = $region29
    $region28: #{tpu_custom_call.1} parent=1 // pred_region
      %s60 = scalar_lea.smem [#allocation2], 0
      %61 = sst [smem:[%s60]] 0.0
    $region29: #{tpu_custom_call.1} parent=1 // pred_fallthru
      _
    %v62 = vld [vmem:[#allocation3] sm:$0xff]
    %v63 = vld [vmem:[#allocation3 + $0x8] sm:$0xff]
    %v64 = vld [vmem:[#allocation3 + $0x10] sm:$0xff]
    %v65 = vld [vmem:[#allocation3 + $0x18] sm:$0xff]
    %v66 = vld [vmem:[#allocation6] sm:$0xff]
    %v67 = vld [vmem:[#allocation6 + $0x8] sm:$0xff]
    %v68 = vld [vmem:[#allocation6 + $0x10] sm:$0xff]
    %v69 = vld [vmem:[#allocation6 + $0x18] sm:$0xff]
    %v70 = vld [vmem:[#allocation8] sm:$0xff]
    %v71 = vld [vmem:[#allocation8 + $0x8] sm:$0xff]
    %v72 = vld [vmem:[#allocation8 + $0x10] sm:$0xff]
    %v73 = vld [vmem:[#allocation8 + $0x18] sm:$0xff]
    %v74 = vsub.f32 %v62, %v66
    %v75 = vsub.f32 %v63, %v67
    %v76 = vsub.f32 %v64, %v68
    %v77 = vsub.f32 %v65, %v69
    %v78 = vsub.f32 %v62, %v70
    %v79 = vsub.f32 %v63, %v71
    %v80 = vsub.f32 %v64, %v72
    %v81 = vsub.f32 %v65, %v73
    %v82 = vmul.f32 %v74, %v74
    %v83 = vmul.f32 %v75, %v75
    %v84 = vmul.f32 %v76, %v76
    %v85 = vmul.f32 %v77, %v77
    %v86 = vmul.f32 %v78, %v78
    %v87 = vmul.f32 %v79, %v79
    %v88 = vmul.f32 %v80, %v80
    %v89 = vmul.f32 %v81, %v81
    %v90 = vsub.f32 %v82, %v86
    %v91 = vsub.f32 %v83, %v87
    %v92 = vsub.f32 %v84, %v88
    %v93 = vsub.f32 %v85, %v89
    %v94 = vadd.f32 %v90, %v91
    %95 = vadd.xlane.f32.xlu0 %v94
    %v96 = vpop.xlane.xlu0 %95
    %v97 = vadd.f32 %v92, %v93
    %98 = vadd.xlane.f32.xlu0 %v97
    %v99 = vpop.xlane.xlu0 %98
    %v100 = vmul.f32 %v62, %v70
    %v101 = vmul.f32 %v63, %v71
    %v102 = vmul.f32 %v64, %v72
    %v103 = vmul.f32 %v65, %v73
    %v104 = vadd.f32 %v100, %v101
    %105 = vadd.xlane.f32.xlu0 %v104
    %v106 = vpop.xlane.xlu0 %105
    %v107 = vadd.f32 %v102, %v103
    %108 = vadd.xlane.f32.xlu0 %v107
    %v109 = vpop.xlane.xlu0 %108
    %v110 = vand.u32 2147483647, %v106
    %v111 = vand.u32 2147483647, %v109
    %v112 = vmul.f32 %v110, 0.1
    %v113 = vmul.f32 %v111, 0.1
    %v114 = vadd.f32 %v96, %v112
    %v115 = vadd.f32 %v99, %v113
    %v116 = vadd.f32 %v114, 2.0
    %v117 = vadd.f32 %v115, 2.0
    %v118 = vmax.f32 %v116, 0.0
    %v119 = vmax.f32 %v117, 0.0
    %s120 = smul.u32 0, 16
    %v121 = vlaneseq
    %v122 = vshrl.u32 %v121, 7
    %v123 = vadd.s32 %v122, 8
    %v124 = vstv %s120
    %v125 = vadd.s32 %v124, %v122
    %v126 = vadd.s32 %v124, %v123
    %vm127 = vcmp.lt.s32.totalorder %v125, 16
    %vm128 = vcmp.lt.s32.totalorder %v126, 16
    %v129 = vsel %vm127, %v118, 0.0
    %v130 = vsel %vm128, %v119, 0.0
    %s131 = sld [smem:[#allocation2]]
    %vm132 = vcmask 7168
    %v133 = vsel %vm132, %v129, 0.0
    %v134 = vsel %vm132, %v130, 0.0
    %v135 = vadd.f32 %v133, %v134
    %136 = vadd.xlane.f32.xlu0 %v135
    %v137 = vpop.xlane.xlu0 %136
    %v138 = vrot.slane %v137, 4
    %v139 = vadd.f32 %v137, %v138
    %v140 = vrot.slane %v139, 2
    %v141 = vadd.f32 %v139, %v140
    %v142 = vrot.slane %v141, 1
    %v143 = vadd.f32 %v141, %v142
    %s144 = vtos %v143
    %s145 = sadd.f32 %s131, %s144
    %s146 = scalar_lea.smem [#allocation2], 0
    %147 = sst [smem:[%s146]] %s145
    // Predicated region
    $region30: #{tpu_custom_call.1} parent=1 // pred_check
      %p148 = pneg %p56
    $region31: #{tpu_custom_call.1} parent=1 // pred_check_branch
      %150 = sbr.rel (%p148) target = $region33
    $region32: #{tpu_custom_call.1} parent=1 // pred_region
      %s151 = sld [smem:[#allocation2]]
      %v152 = vrcp.pop 16.0
      %s153 = vtos %v152
      %s154 = smul.f32 %s151, %s153
      %s155 = scalar_lea.smem [#allocation9], 0
      %156 = sst [smem:[%s155]] %s154
    $region33: #{tpu_custom_call.1} parent=1 // pred_fallthru
      _
    // Predicated region
    $region34: #{tpu_custom_call.1} parent=1 // pred_check
      _
    $region35: #{tpu_custom_call.1} parent=1 // pred_check_branch
      %158 = sbr.rel (0) target = $region37
    $region36: #{tpu_custom_call.1} parent=1 // pred_region
      %s160 = ssub.s32 16, 16
      %161 = vsyncadd [#allocation5], %s160
      %164 = dma.smem_to_hbm [#allocation9], 16, %s3, [#allocation5]
    $region37: #{tpu_custom_call.1} parent=1 // pred_fallthru
      _
    // Predicated region
    $region38: #{tpu_custom_call.1} parent=1 // pred_check
      _
    $region39: #{tpu_custom_call.1} parent=1 // pred_check_branch
      %166 = sbr.rel (0) target = $region41
    $region40: #{tpu_custom_call.1} parent=1 // pred_region
      %167 = dma.done [#allocation5], 16
    $region41: #{tpu_custom_call.1} parent=1 // pred_fallthru
      _
    %168 = sfence
    %169 = vsyncpa [#allocation4], 1
    %170 = vsyncpa [#allocation7], 1
    %171 = vsyncpa [#allocation5], 1

</llo_original>
